<compile_context>
chip_gen: v7x
topology: tpu7x:2x2x1
jax: 0.10.0
libtpu: 0.0.40
codegen_flags: <defaults>
</compile_context>

<pallas_src>
import math

import jax
import jax.numpy as jnp
import numpy as np
from jax.experimental import pallas as pl
from jax.experimental.pallas import tpu as pltpu


def _round_up(x, m):
    return ((x + m - 1) // m) * m


def _cdiv(a, b):
    return (a + b - 1) // b


def _level_params(H, W, L):
    """Kernel size and (floor) leading pad for one pyramid level."""
    kh = int(math.ceil(H / L))
    kw = int(math.ceil(W / L))
    h_pad1 = (kh * L - H) // 2   # floor(pad_total / 2), matches torch
    w_pad1 = (kw * L - W) // 2
    return kh, kw, h_pad1, w_pad1


def _make_spp_kernel(H, W, levels, nc_tile, dtype):
    """Fused multi-level max-pool kernel.

    x_ref:  (H, W, nc_tile)       -- flattened N*C on the 128-lane axis
    o_refs: one per level, (L*L, nc_tile)
    """
    level_params = [_level_params(H, W, L) for L in levels]

    def kernel(x_ref, *o_refs):
        # Single hoisted zero row, reused wherever a zero operand is needed
        # (JAX does not CSE broadcast_in_dim; build it exactly once).
        zero_row = jnp.zeros((1, nc_tile), dtype=dtype)
        # TODO(synk): derive nestable coarse levels (kh_coarse % kh_fine == 0
        # with aligned pads) from finer-level cells instead of re-walking the
        # full (H, W) slab for every level.
        for (L, (kh, kw, h_pad1, w_pad1)), o_ref in zip(
                zip(levels, level_params), o_refs):
            for oh in range(L):
                h_lo = max(oh * kh - h_pad1, 0)
                h_hi = min((oh + 1) * kh - h_pad1, H)
                h_touches_pad = (h_hi - h_lo) < kh

                row_max = None
                if h_hi > h_lo:
                    # h-direction reduce: dense (W, nc_tile) slab loads with an
                    # elementwise (VPU) running max -- full-width vld each time.
                    row_max = x_ref[h_lo]
                    for h in range(h_lo + 1, h_hi):
                        row_max = jnp.maximum(row_max, x_ref[h])

                cells = []
                for ow in range(L):
                    w_lo = max(ow * kw - w_pad1, 0)
                    w_hi = min((ow + 1) * kw - w_pad1, W)
                    w_touches_pad = (w_hi - w_lo) < kw
                    if row_max is None or w_hi <= w_lo:
                        # Window lies entirely in the zero padding.
                        cells.append(zero_row)
                        continue
                    # w-direction reduce: sublane (XLU) max over the window.
                    cell = jnp.max(row_max[w_lo:w_hi], axis=0, keepdims=True)
                    if h_touches_pad or w_touches_pad:
                        # F.pad(value=0): zero padding participates in the max.
                        cell = jnp.maximum(cell, zero_row)
                    cells.append(cell)
                # Store this output row immediately; keeps live vregs small.
                row_out = cells[0] if L == 1 else jnp.concatenate(cells, axis=0)
                o_ref[oh * L:(oh + 1) * L, :] = row_out

    return kernel


def _choose_nc_tiling(NC, H, W, itemsize):
    """Pick the lane-axis (N*C) tile size and the number of grid steps."""
    min_lanes = min(NC, 128)
    if 2 * H * W * min_lanes * itemsize > (44 << 20):
        # TODO(synk): tile the spatial axis (grid over H bands marked
        # "arbitrary" with a running-max VMEM accumulator finalized via
        # pl.when) before using this on very large feature maps.
        raise NotImplementedError(
            "SpatialPyramidPooling Pallas kernel: feature map too large for a "
            "single VMEM block; spatial tiling is not implemented.")
    if NC <= 128:
        return NC, 1                      # block == full lane dim, one step
    # VMEM budget: ~8 MiB per input block (the pipeline double-buffers it).
    vmem_cap = ((8 << 20) // (H * W * itemsize)) // 128 * 128
    # vreg budget: keep one (W, nc_tile) row slab at <= ~16 vregs (64 KiB).
    vreg_cap = (65536 // (W * itemsize)) // 128 * 128
    nc_tile = max(128, min(1024, vmem_cap, vreg_cap))
    # v7x has 2 TensorCores sharing the "parallel" grid axis: guarantee at
    # least 2 grid steps whenever NC > 128 (no effect on v5e/v6e, 1 TC).
    nc_tile = min(nc_tile, _round_up(_cdiv(NC, 2), 128))
    return nc_tile, _cdiv(NC, nc_tile)


def spatial_pyramid_pool(x, dimension_levels):
    """JAX/Pallas equivalent of SpatialPyramidPooling.forward.

    x: (N, C, H, W)  ->  (N, sum_i C * level_i**2)
    """
    levels = tuple(int(L) for L in dimension_levels)
    N, C, H, W = x.shape
    NC = N * C
    dtype = x.dtype
    itemsize = jnp.dtype(dtype).itemsize

    # Lane-dense layout: flattened N*C on the last (128-lane) axis so every
    # window max is elementwise over lane-dense slabs.
    # TODO(synk): this relayout costs one extra HBM read+write of the feature
    # map; eliminate it by having the upstream producer emit HWNC directly (or
    # via CompilerParams(allow_input_fusion) once validated on the target
    # toolchain) -- the kernel itself reads HBM exactly once.
    x_hwnc = jnp.transpose(x, (2, 3, 0, 1)).reshape(H, W, NC)

    nc_tile, num_tiles = _choose_nc_tiling(NC, H, W, itemsize)

    out_shape = tuple(
        jax.ShapeDtypeStruct((L * L, NC), dtype) for L in levels)
    out_specs = tuple(
        pl.BlockSpec((L * L, nc_tile), lambda i: (0, i)) for L in levels)

    in_block_bytes = H * W * nc_tile * itemsize
    out_block_bytes = sum(L * L * nc_tile * itemsize for L in levels)
    # Explicit VMEM limit: double-buffered input + double-buffered outputs +
    # slack, clamped below v7x's 64 MiB physical VMEM per TensorCore.
    vmem_limit = int(min(
        48 << 20,
        max(2 * in_block_bytes + 2 * out_block_bytes + (2 << 20), 16 << 20)))

    cost = pl.CostEstimate(
        flops=len(levels) * H * W * NC,      # ~one max per element per level
        transcendentals=0,
        bytes_accessed=H * W * NC * itemsize
        + sum(L * L * NC * itemsize for L in levels))

    kernel = _make_spp_kernel(H, W, levels, nc_tile, dtype)
    outs = pl.pallas_call(
        kernel,
        out_shape=out_shape,
        grid_spec=pltpu.PrefetchScalarGridSpec(
            num_scalar_prefetch=0,
            grid=(num_tiles,),
            in_specs=[pl.BlockSpec((H, W, nc_tile), lambda i: (0, 0, i))],
            out_specs=out_specs,
        ),
        compiler_params=pltpu.CompilerParams(
            dimension_semantics=("parallel",),
            vmem_limit_bytes=vmem_limit),
        cost_estimate=cost,
    )(x_hwnc)

    # Re-order each level's (L*L, N*C) result to match PyTorch's
    # x.view(N, -1) flattening of an (N, C, L, L) tensor.
    pieces = []
    for L, o in zip(levels, outs):
        o = o.reshape(L * L, N, C)
        pieces.append(jnp.transpose(o, (1, 2, 0)).reshape(N, C * L * L))
    return jnp.concatenate(pieces, axis=1)


def _reference_spp(x, dimension_levels):
    """Pure-JAX reference (no Pallas) for verification."""
    N, C, H, W = x.shape
    outs = []
    for L in dimension_levels:
        kh = int(math.ceil(H / L))
        kw = int(math.ceil(W / L))
        h_pad_total = kh * L - H
        w_pad_total = kw * L - W
        h_pad1 = h_pad_total // 2
        w_pad1 = w_pad_total // 2
        xp = jnp.pad(
            x,
            ((0, 0), (0, 0),
             (h_pad1, h_pad_total - h_pad1),
             (w_pad1, w_pad_total - w_pad1)),
            mode="constant", constant_values=0)
        pooled = xp.reshape(N, C, L, kh, L, kw).max(axis=(3, 5))
        outs.append(pooled.reshape(N, -1))
    return jnp.concatenate(outs, axis=1)


if __name__ == "__main__":
    # SpatialPyramidPooling has no learnable parameters; dimension_levels is
    # the only configuration.  Level 3 exercises the zero-padding path.
    dimension_levels = (1, 2, 3, 4)

    key = jax.random.PRNGKey(0)
    N, C, H, W = 2, 4, 16, 16
    x = jax.random.normal(key, (N, C, H, W), dtype=jnp.float32)

    out = jax.block_until_ready(spatial_pyramid_pool(x, dimension_levels))

    expected_width = sum(C * L * L for L in dimension_levels)
    assert out.shape == (N, expected_width), out.shape

    ref = jax.block_until_ready(_reference_spp(x, dimension_levels))
    np.testing.assert_allclose(np.asarray(out), np.asarray(ref),
                               rtol=0.0, atol=0.0)

    print("KERNEL_OK")
</pallas_src>

<mosaic_0001>
module attributes {stable_mosaic.version = 11 : i64} {
  func.func @kernel(%arg0: i32, %arg1: memref<16x16x8xf32, #tpu.memory_space<vmem>>, %arg2: memref<1x8xf32, #tpu.memory_space<vmem>>, %arg3: memref<4x8xf32, #tpu.memory_space<vmem>>, %arg4: memref<9x8xf32, #tpu.memory_space<vmem>>, %arg5: memref<16x8xf32, #tpu.memory_space<vmem>>) attributes {dimension_semantics = [#tpu.dimension_semantics<parallel>], iteration_bounds = array<i64: 1>, scalar_prefetch = 0 : i64, scratch_operands = 0 : i64, tpu.core_type = #tpu.core_type<tc>, window_params = [{transform_indices = @transform_0, window_bounds = array<i64: 16, 16, 8>}, {transform_indices = @transform_1, window_bounds = array<i64: 1, 8>}, {transform_indices = @transform_2, window_bounds = array<i64: 4, 8>}, {transform_indices = @transform_3, window_bounds = array<i64: 9, 8>}, {transform_indices = @transform_4, window_bounds = array<i64: 16, 8>}]} {
    %cst = arith.constant 0.000000e+00 : f32
    %0 = vector.broadcast %cst : f32 to vector<1x8xf32>
    %c0 = arith.constant 0 : index
    %c0_0 = arith.constant 0 : index
    %c0_1 = arith.constant 0 : index
    %1 = vector.load %arg1[%c0, %c0_0, %c0_1] : memref<16x16x8xf32, #tpu.memory_space<vmem>>, vector<1x16x8xf32>
    %2 = vector.shape_cast %1 : vector<1x16x8xf32> to vector<16x8xf32>
    %c1 = arith.constant 1 : index
    %c0_2 = arith.constant 0 : index
    %c0_3 = arith.constant 0 : index
    %3 = vector.load %arg1[%c1, %c0_2, %c0_3] : memref<16x16x8xf32, #tpu.memory_space<vmem>>, vector<1x16x8xf32>
    %4 = vector.shape_cast %3 : vector<1x16x8xf32> to vector<16x8xf32>
    %5 = arith.maximumf %2, %4 : vector<16x8xf32>
    %c2 = arith.constant 2 : index
    %c0_4 = arith.constant 0 : index
    %c0_5 = arith.constant 0 : index
    %6 = vector.load %arg1[%c2, %c0_4, %c0_5] : memref<16x16x8xf32, #tpu.memory_space<vmem>>, vector<1x16x8xf32>
    %7 = vector.shape_cast %6 : vector<1x16x8xf32> to vector<16x8xf32>
    %8 = arith.maximumf %5, %7 : vector<16x8xf32>
    %c3 = arith.constant 3 : index
    %c0_6 = arith.constant 0 : index
    %c0_7 = arith.constant 0 : index
    %9 = vector.load %arg1[%c3, %c0_6, %c0_7] : memref<16x16x8xf32, #tpu.memory_space<vmem>>, vector<1x16x8xf32>
    %10 = vector.shape_cast %9 : vector<1x16x8xf32> to vector<16x8xf32>
    %11 = arith.maximumf %8, %10 : vector<16x8xf32>
    %c4 = arith.constant 4 : index
    %c0_8 = arith.constant 0 : index
    %c0_9 = arith.constant 0 : index
    %12 = vector.load %arg1[%c4, %c0_8, %c0_9] : memref<16x16x8xf32, #tpu.memory_space<vmem>>, vector<1x16x8xf32>
    %13 = vector.shape_cast %12 : vector<1x16x8xf32> to vector<16x8xf32>
    %14 = arith.maximumf %11, %13 : vector<16x8xf32>
    %c5 = arith.constant 5 : index
    %c0_10 = arith.constant 0 : index
    %c0_11 = arith.constant 0 : index
    %15 = vector.load %arg1[%c5, %c0_10, %c0_11] : memref<16x16x8xf32, #tpu.memory_space<vmem>>, vector<1x16x8xf32>
    %16 = vector.shape_cast %15 : vector<1x16x8xf32> to vector<16x8xf32>
    %17 = arith.maximumf %14, %16 : vector<16x8xf32>
    %c6 = arith.constant 6 : index
    %c0_12 = arith.constant 0 : index
    %c0_13 = arith.constant 0 : index
    %18 = vector.load %arg1[%c6, %c0_12, %c0_13] : memref<16x16x8xf32, #tpu.memory_space<vmem>>, vector<1x16x8xf32>
    %19 = vector.shape_cast %18 : vector<1x16x8xf32> to vector<16x8xf32>
    %20 = arith.maximumf %17, %19 : vector<16x8xf32>
    %c7 = arith.constant 7 : index
    %c0_14 = arith.constant 0 : index
    %c0_15 = arith.constant 0 : index
    %21 = vector.load %arg1[%c7, %c0_14, %c0_15] : memref<16x16x8xf32, #tpu.memory_space<vmem>>, vector<1x16x8xf32>
    %22 = vector.shape_cast %21 : vector<1x16x8xf32> to vector<16x8xf32>
    %23 = arith.maximumf %20, %22 : vector<16x8xf32>
    %c8 = arith.constant 8 : index
    %c0_16 = arith.constant 0 : index
    %c0_17 = arith.constant 0 : index
    %24 = vector.load %arg1[%c8, %c0_16, %c0_17] : memref<16x16x8xf32, #tpu.memory_space<vmem>>, vector<1x16x8xf32>
    %25 = vector.shape_cast %24 : vector<1x16x8xf32> to vector<16x8xf32>
    %26 = arith.maximumf %23, %25 : vector<16x8xf32>
    %c9 = arith.constant 9 : index
    %c0_18 = arith.constant 0 : index
    %c0_19 = arith.constant 0 : index
    %27 = vector.load %arg1[%c9, %c0_18, %c0_19] : memref<16x16x8xf32, #tpu.memory_space<vmem>>, vector<1x16x8xf32>
    %28 = vector.shape_cast %27 : vector<1x16x8xf32> to vector<16x8xf32>
    %29 = arith.maximumf %26, %28 : vector<16x8xf32>
    %c10 = arith.constant 10 : index
    %c0_20 = arith.constant 0 : index
    %c0_21 = arith.constant 0 : index
    %30 = vector.load %arg1[%c10, %c0_20, %c0_21] : memref<16x16x8xf32, #tpu.memory_space<vmem>>, vector<1x16x8xf32>
    %31 = vector.shape_cast %30 : vector<1x16x8xf32> to vector<16x8xf32>
    %32 = arith.maximumf %29, %31 : vector<16x8xf32>
    %c11 = arith.constant 11 : index
    %c0_22 = arith.constant 0 : index
    %c0_23 = arith.constant 0 : index
    %33 = vector.load %arg1[%c11, %c0_22, %c0_23] : memref<16x16x8xf32, #tpu.memory_space<vmem>>, vector<1x16x8xf32>
    %34 = vector.shape_cast %33 : vector<1x16x8xf32> to vector<16x8xf32>
    %35 = arith.maximumf %32, %34 : vector<16x8xf32>
    %c12 = arith.constant 12 : index
    %c0_24 = arith.constant 0 : index
    %c0_25 = arith.constant 0 : index
    %36 = vector.load %arg1[%c12, %c0_24, %c0_25] : memref<16x16x8xf32, #tpu.memory_space<vmem>>, vector<1x16x8xf32>
    %37 = vector.shape_cast %36 : vector<1x16x8xf32> to vector<16x8xf32>
    %38 = arith.maximumf %35, %37 : vector<16x8xf32>
    %c13 = arith.constant 13 : index
    %c0_26 = arith.constant 0 : index
    %c0_27 = arith.constant 0 : index
    %39 = vector.load %arg1[%c13, %c0_26, %c0_27] : memref<16x16x8xf32, #tpu.memory_space<vmem>>, vector<1x16x8xf32>
    %40 = vector.shape_cast %39 : vector<1x16x8xf32> to vector<16x8xf32>
    %41 = arith.maximumf %38, %40 : vector<16x8xf32>
    %c14 = arith.constant 14 : index
    %c0_28 = arith.constant 0 : index
    %c0_29 = arith.constant 0 : index
    %42 = vector.load %arg1[%c14, %c0_28, %c0_29] : memref<16x16x8xf32, #tpu.memory_space<vmem>>, vector<1x16x8xf32>
    %43 = vector.shape_cast %42 : vector<1x16x8xf32> to vector<16x8xf32>
    %44 = arith.maximumf %41, %43 : vector<16x8xf32>
    %c15 = arith.constant 15 : index
    %c0_30 = arith.constant 0 : index
    %c0_31 = arith.constant 0 : index
    %45 = vector.load %arg1[%c15, %c0_30, %c0_31] : memref<16x16x8xf32, #tpu.memory_space<vmem>>, vector<1x16x8xf32>
    %46 = vector.shape_cast %45 : vector<1x16x8xf32> to vector<16x8xf32>
    %47 = arith.maximumf %44, %46 : vector<16x8xf32>
    %cst_32 = arith.constant dense<0xFF800000> : vector<8xf32>
    %48 = vector.multi_reduction <maximumf>, %47, %cst_32 [0] : vector<16x8xf32> to vector<8xf32>
    %49 = vector.shape_cast %48 : vector<8xf32> to vector<1x8xf32>
    %c0_33 = arith.constant 0 : index
    %c0_34 = arith.constant 0 : index
    %50 = vector.load %arg2[%c0_33, %c0_34] : memref<1x8xf32, #tpu.memory_space<vmem>>, vector<1x8xf32>
    tpu.vector_store %arg2[%c0_33, %c0_34], %49 {strides = array<i32>} : memref<1x8xf32, #tpu.memory_space<vmem>>, vector<1x8xf32>,
    %c0_35 = arith.constant 0 : index
    %c0_36 = arith.constant 0 : index
    %c0_37 = arith.constant 0 : index
    %51 = vector.load %arg1[%c0_35, %c0_36, %c0_37] : memref<16x16x8xf32, #tpu.memory_space<vmem>>, vector<1x16x8xf32>
    %52 = vector.shape_cast %51 : vector<1x16x8xf32> to vector<16x8xf32>
    %c1_38 = arith.constant 1 : index
    %c0_39 = arith.constant 0 : index
    %c0_40 = arith.constant 0 : index
    %53 = vector.load %arg1[%c1_38, %c0_39, %c0_40] : memref<16x16x8xf32, #tpu.memory_space<vmem>>, vector<1x16x8xf32>
    %54 = vector.shape_cast %53 : vector<1x16x8xf32> to vector<16x8xf32>
    %55 = arith.maximumf %52, %54 : vector<16x8xf32>
    %c2_41 = arith.constant 2 : index
    %c0_42 = arith.constant 0 : index
    %c0_43 = arith.constant 0 : index
    %56 = vector.load %arg1[%c2_41, %c0_42, %c0_43] : memref<16x16x8xf32, #tpu.memory_space<vmem>>, vector<1x16x8xf32>
    %57 = vector.shape_cast %56 : vector<1x16x8xf32> to vector<16x8xf32>
    %58 = arith.maximumf %55, %57 : vector<16x8xf32>
    %c3_44 = arith.constant 3 : index
    %c0_45 = arith.constant 0 : index
    %c0_46 = arith.constant 0 : index
    %59 = vector.load %arg1[%c3_44, %c0_45, %c0_46] : memref<16x16x8xf32, #tpu.memory_space<vmem>>, vector<1x16x8xf32>
    %60 = vector.shape_cast %59 : vector<1x16x8xf32> to vector<16x8xf32>
    %61 = arith.maximumf %58, %60 : vector<16x8xf32>
    %c4_47 = arith.constant 4 : index
    %c0_48 = arith.constant 0 : index
    %c0_49 = arith.constant 0 : index
    %62 = vector.load %arg1[%c4_47, %c0_48, %c0_49] : memref<16x16x8xf32, #tpu.memory_space<vmem>>, vector<1x16x8xf32>
    %63 = vector.shape_cast %62 : vector<1x16x8xf32> to vector<16x8xf32>
    %64 = arith.maximumf %61, %63 : vector<16x8xf32>
    %c5_50 = arith.constant 5 : index
    %c0_51 = arith.constant 0 : index
    %c0_52 = arith.constant 0 : index
    %65 = vector.load %arg1[%c5_50, %c0_51, %c0_52] : memref<16x16x8xf32, #tpu.memory_space<vmem>>, vector<1x16x8xf32>
    %66 = vector.shape_cast %65 : vector<1x16x8xf32> to vector<16x8xf32>
    %67 = arith.maximumf %64, %66 : vector<16x8xf32>
    %c6_53 = arith.constant 6 : index
    %c0_54 = arith.constant 0 : index
    %c0_55 = arith.constant 0 : index
    %68 = vector.load %arg1[%c6_53, %c0_54, %c0_55] : memref<16x16x8xf32, #tpu.memory_space<vmem>>, vector<1x16x8xf32>
    %69 = vector.shape_cast %68 : vector<1x16x8xf32> to vector<16x8xf32>
    %70 = arith.maximumf %67, %69 : vector<16x8xf32>
    %c7_56 = arith.constant 7 : index
    %c0_57 = arith.constant 0 : index
    %c0_58 = arith.constant 0 : index
    %71 = vector.load %arg1[%c7_56, %c0_57, %c0_58] : memref<16x16x8xf32, #tpu.memory_space<vmem>>, vector<1x16x8xf32>
    %72 = vector.shape_cast %71 : vector<1x16x8xf32> to vector<16x8xf32>
    %73 = arith.maximumf %70, %72 : vector<16x8xf32>
    %74 = vector.extract_strided_slice %73 {offsets = [0, 0], sizes = [8, 8], strides = [1, 1]} : vector<16x8xf32> to vector<8x8xf32>
    %cst_59 = arith.constant dense<0xFF800000> : vector<8xf32>
    %75 = vector.multi_reduction <maximumf>, %74, %cst_59 [0] : vector<8x8xf32> to vector<8xf32>
    %76 = vector.shape_cast %75 : vector<8xf32> to vector<1x8xf32>
    %77 = vector.extract_strided_slice %73 {offsets = [8, 0], sizes = [8, 8], strides = [1, 1]} : vector<16x8xf32> to vector<8x8xf32>
    %cst_60 = arith.constant dense<0xFF800000> : vector<8xf32>
    %78 = vector.multi_reduction <maximumf>, %77, %cst_60 [0] : vector<8x8xf32> to vector<8xf32>
    %79 = vector.shape_cast %78 : vector<8xf32> to vector<1x8xf32>
    %80 = tpu.concatenate %76, %79 in 0 : vector<1x8xf32>, vector<1x8xf32> -> vector<2x8xf32>
    %c0_61 = arith.constant 0 : index
    %c0_62 = arith.constant 0 : index
    %81 = vector.load %arg3[%c0_61, %c0_62] : memref<4x8xf32, #tpu.memory_space<vmem>>, vector<2x8xf32>
    tpu.vector_store %arg3[%c0_61, %c0_62], %80 {strides = array<i32>} : memref<4x8xf32, #tpu.memory_space<vmem>>, vector<2x8xf32>,
    %c8_63 = arith.constant 8 : index
    %c0_64 = arith.constant 0 : index
    %c0_65 = arith.constant 0 : index
    %82 = vector.load %arg1[%c8_63, %c0_64, %c0_65] : memref<16x16x8xf32, #tpu.memory_space<vmem>>, vector<1x16x8xf32>
    %83 = vector.shape_cast %82 : vector<1x16x8xf32> to vector<16x8xf32>
    %c9_66 = arith.constant 9 : index
    %c0_67 = arith.constant 0 : index
    %c0_68 = arith.constant 0 : index
    %84 = vector.load %arg1[%c9_66, %c0_67, %c0_68] : memref<16x16x8xf32, #tpu.memory_space<vmem>>, vector<1x16x8xf32>
    %85 = vector.shape_cast %84 : vector<1x16x8xf32> to vector<16x8xf32>
    %86 = arith.maximumf %83, %85 : vector<16x8xf32>
    %c10_69 = arith.constant 10 : index
    %c0_70 = arith.constant 0 : index
    %c0_71 = arith.constant 0 : index
    %87 = vector.load %arg1[%c10_69, %c0_70, %c0_71] : memref<16x16x8xf32, #tpu.memory_space<vmem>>, vector<1x16x8xf32>
    %88 = vector.shape_cast %87 : vector<1x16x8xf32> to vector<16x8xf32>
    %89 = arith.maximumf %86, %88 : vector<16x8xf32>
    %c11_72 = arith.constant 11 : index
    %c0_73 = arith.constant 0 : index
    %c0_74 = arith.constant 0 : index
    %90 = vector.load %arg1[%c11_72, %c0_73, %c0_74] : memref<16x16x8xf32, #tpu.memory_space<vmem>>, vector<1x16x8xf32>
    %91 = vector.shape_cast %90 : vector<1x16x8xf32> to vector<16x8xf32>
    %92 = arith.maximumf %89, %91 : vector<16x8xf32>
    %c12_75 = arith.constant 12 : index
    %c0_76 = arith.constant 0 : index
    %c0_77 = arith.constant 0 : index
    %93 = vector.load %arg1[%c12_75, %c0_76, %c0_77] : memref<16x16x8xf32, #tpu.memory_space<vmem>>, vector<1x16x8xf32>
    %94 = vector.shape_cast %93 : vector<1x16x8xf32> to vector<16x8xf32>
    %95 = arith.maximumf %92, %94 : vector<16x8xf32>
    %c13_78 = arith.constant 13 : index
    %c0_79 = arith.constant 0 : index
    %c0_80 = arith.constant 0 : index
    %96 = vector.load %arg1[%c13_78, %c0_79, %c0_80] : memref<16x16x8xf32, #tpu.memory_space<vmem>>, vector<1x16x8xf32>
    %97 = vector.shape_cast %96 : vector<1x16x8xf32> to vector<16x8xf32>
    %98 = arith.maximumf %95, %97 : vector<16x8xf32>
    %c14_81 = arith.constant 14 : index
    %c0_82 = arith.constant 0 : index
    %c0_83 = arith.constant 0 : index
    %99 = vector.load %arg1[%c14_81, %c0_82, %c0_83] : memref<16x16x8xf32, #tpu.memory_space<vmem>>, vector<1x16x8xf32>
    %100 = vector.shape_cast %99 : vector<1x16x8xf32> to vector<16x8xf32>
    %101 = arith.maximumf %98, %100 : vector<16x8xf32>
    %c15_84 = arith.constant 15 : index
    %c0_85 = arith.constant 0 : index
    %c0_86 = arith.constant 0 : index
    %102 = vector.load %arg1[%c15_84, %c0_85, %c0_86] : memref<16x16x8xf32, #tpu.memory_space<vmem>>, vector<1x16x8xf32>
    %103 = vector.shape_cast %102 : vector<1x16x8xf32> to vector<16x8xf32>
    %104 = arith.maximumf %101, %103 : vector<16x8xf32>
    %105 = vector.extract_strided_slice %104 {offsets = [0, 0], sizes = [8, 8], strides = [1, 1]} : vector<16x8xf32> to vector<8x8xf32>
    %cst_87 = arith.constant dense<0xFF800000> : vector<8xf32>
    %106 = vector.multi_reduction <maximumf>, %105, %cst_87 [0] : vector<8x8xf32> to vector<8xf32>
    %107 = vector.shape_cast %106 : vector<8xf32> to vector<1x8xf32>
    %108 = vector.extract_strided_slice %104 {offsets = [8, 0], sizes = [8, 8], strides = [1, 1]} : vector<16x8xf32> to vector<8x8xf32>
    %cst_88 = arith.constant dense<0xFF800000> : vector<8xf32>
    %109 = vector.multi_reduction <maximumf>, %108, %cst_88 [0] : vector<8x8xf32> to vector<8xf32>
    %110 = vector.shape_cast %109 : vector<8xf32> to vector<1x8xf32>
    %111 = tpu.concatenate %107, %110 in 0 : vector<1x8xf32>, vector<1x8xf32> -> vector<2x8xf32>
    %c2_89 = arith.constant 2 : index
    %c0_90 = arith.constant 0 : index
    %112 = vector.load %arg3[%c2_89, %c0_90] : memref<4x8xf32, #tpu.memory_space<vmem>>, vector<2x8xf32>
    tpu.vector_store %arg3[%c2_89, %c0_90], %111 {strides = array<i32>} : memref<4x8xf32, #tpu.memory_space<vmem>>, vector<2x8xf32>,
    %c0_91 = arith.constant 0 : index
    %c0_92 = arith.constant 0 : index
    %c0_93 = arith.constant 0 : index
    %113 = vector.load %arg1[%c0_91, %c0_92, %c0_93] : memref<16x16x8xf32, #tpu.memory_space<vmem>>, vector<1x16x8xf32>
    %114 = vector.shape_cast %113 : vector<1x16x8xf32> to vector<16x8xf32>
    %c1_94 = arith.constant 1 : index
    %c0_95 = arith.constant 0 : index
    %c0_96 = arith.constant 0 : index
    %115 = vector.load %arg1[%c1_94, %c0_95, %c0_96] : memref<16x16x8xf32, #tpu.memory_space<vmem>>, vector<1x16x8xf32>
    %116 = vector.shape_cast %115 : vector<1x16x8xf32> to vector<16x8xf32>
    %117 = arith.maximumf %114, %116 : vector<16x8xf32>
    %c2_97 = arith.constant 2 : index
    %c0_98 = arith.constant 0 : index
    %c0_99 = arith.constant 0 : index
    %118 = vector.load %arg1[%c2_97, %c0_98, %c0_99] : memref<16x16x8xf32, #tpu.memory_space<vmem>>, vector<1x16x8xf32>
    %119 = vector.shape_cast %118 : vector<1x16x8xf32> to vector<16x8xf32>
    %120 = arith.maximumf %117, %119 : vector<16x8xf32>
    %c3_100 = arith.constant 3 : index
    %c0_101 = arith.constant 0 : index
    %c0_102 = arith.constant 0 : index
    %121 = vector.load %arg1[%c3_100, %c0_101, %c0_102] : memref<16x16x8xf32, #tpu.memory_space<vmem>>, vector<1x16x8xf32>
    %122 = vector.shape_cast %121 : vector<1x16x8xf32> to vector<16x8xf32>
    %123 = arith.maximumf %120, %122 : vector<16x8xf32>
    %c4_103 = arith.constant 4 : index
    %c0_104 = arith.constant 0 : index
    %c0_105 = arith.constant 0 : index
    %124 = vector.load %arg1[%c4_103, %c0_104, %c0_105] : memref<16x16x8xf32, #tpu.memory_space<vmem>>, vector<1x16x8xf32>
    %125 = vector.shape_cast %124 : vector<1x16x8xf32> to vector<16x8xf32>
    %126 = arith.maximumf %123, %125 : vector<16x8xf32>
    %127 = vector.extract_strided_slice %126 {offsets = [0, 0], sizes = [5, 8], strides = [1, 1]} : vector<16x8xf32> to vector<5x8xf32>
    %cst_106 = arith.constant dense<0xFF800000> : vector<8xf32>
    %128 = vector.multi_reduction <maximumf>, %127, %cst_106 [0] : vector<5x8xf32> to vector<8xf32>
    %129 = vector.shape_cast %128 : vector<8xf32> to vector<1x8xf32>
    %130 = arith.maximumf %129, %0 : vector<1x8xf32>
    %131 = vector.extract_strided_slice %126 {offsets = [5, 0], sizes = [6, 8], strides = [1, 1]} : vector<16x8xf32> to vector<6x8xf32>
    %cst_107 = arith.constant dense<0xFF800000> : vector<8xf32>
    %132 = vector.multi_reduction <maximumf>, %131, %cst_107 [0] : vector<6x8xf32> to vector<8xf32>
    %133 = vector.shape_cast %132 : vector<8xf32> to vector<1x8xf32>
    %134 = arith.maximumf %133, %0 : vector<1x8xf32>
    %135 = vector.extract_strided_slice %126 {offsets = [11, 0], sizes = [5, 8], strides = [1, 1]} : vector<16x8xf32> to vector<5x8xf32>
    %cst_108 = arith.constant dense<0xFF800000> : vector<8xf32>
    %136 = vector.multi_reduction <maximumf>, %135, %cst_108 [0] : vector<5x8xf32> to vector<8xf32>
    %137 = vector.shape_cast %136 : vector<8xf32> to vector<1x8xf32>
    %138 = arith.maximumf %137, %0 : vector<1x8xf32>
    %139 = tpu.concatenate %130, %134, %138 in 0 : vector<1x8xf32>, vector<1x8xf32>, vector<1x8xf32> -> vector<3x8xf32>
    %c0_109 = arith.constant 0 : index
    %c0_110 = arith.constant 0 : index
    %140 = vector.load %arg4[%c0_109, %c0_110] : memref<9x8xf32, #tpu.memory_space<vmem>>, vector<3x8xf32>
    tpu.vector_store %arg4[%c0_109, %c0_110], %139 {strides = array<i32>} : memref<9x8xf32, #tpu.memory_space<vmem>>, vector<3x8xf32>,
    %c5_111 = arith.constant 5 : index
    %c0_112 = arith.constant 0 : index
    %c0_113 = arith.constant 0 : index
    %141 = vector.load %arg1[%c5_111, %c0_112, %c0_113] : memref<16x16x8xf32, #tpu.memory_space<vmem>>, vector<1x16x8xf32>
    %142 = vector.shape_cast %141 : vector<1x16x8xf32> to vector<16x8xf32>
    %c6_114 = arith.constant 6 : index
    %c0_115 = arith.constant 0 : index
    %c0_116 = arith.constant 0 : index
    %143 = vector.load %arg1[%c6_114, %c0_115, %c0_116] : memref<16x16x8xf32, #tpu.memory_space<vmem>>, vector<1x16x8xf32>
    %144 = vector.shape_cast %143 : vector<1x16x8xf32> to vector<16x8xf32>
    %145 = arith.maximumf %142, %144 : vector<16x8xf32>
    %c7_117 = arith.constant 7 : index
    %c0_118 = arith.constant 0 : index
    %c0_119 = arith.constant 0 : index
    %146 = vector.load %arg1[%c7_117, %c0_118, %c0_119] : memref<16x16x8xf32, #tpu.memory_space<vmem>>, vector<1x16x8xf32>
    %147 = vector.shape_cast %146 : vector<1x16x8xf32> to vector<16x8xf32>
    %148 = arith.maximumf %145, %147 : vector<16x8xf32>
    %c8_120 = arith.constant 8 : index
    %c0_121 = arith.constant 0 : index
    %c0_122 = arith.constant 0 : index
    %149 = vector.load %arg1[%c8_120, %c0_121, %c0_122] : memref<16x16x8xf32, #tpu.memory_space<vmem>>, vector<1x16x8xf32>
    %150 = vector.shape_cast %149 : vector<1x16x8xf32> to vector<16x8xf32>
    %151 = arith.maximumf %148, %150 : vector<16x8xf32>
    %c9_123 = arith.constant 9 : index
    %c0_124 = arith.constant 0 : index
    %c0_125 = arith.constant 0 : index
    %152 = vector.load %arg1[%c9_123, %c0_124, %c0_125] : memref<16x16x8xf32, #tpu.memory_space<vmem>>, vector<1x16x8xf32>
    %153 = vector.shape_cast %152 : vector<1x16x8xf32> to vector<16x8xf32>
    %154 = arith.maximumf %151, %153 : vector<16x8xf32>
    %c10_126 = arith.constant 10 : index
    %c0_127 = arith.constant 0 : index
    %c0_128 = arith.constant 0 : index
    %155 = vector.load %arg1[%c10_126, %c0_127, %c0_128] : memref<16x16x8xf32, #tpu.memory_space<vmem>>, vector<1x16x8xf32>
    %156 = vector.shape_cast %155 : vector<1x16x8xf32> to vector<16x8xf32>
    %157 = arith.maximumf %154, %156 : vector<16x8xf32>
    %158 = vector.extract_strided_slice %157 {offsets = [0, 0], sizes = [5, 8], strides = [1, 1]} : vector<16x8xf32> to vector<5x8xf32>
    %cst_129 = arith.constant dense<0xFF800000> : vector<8xf32>
    %159 = vector.multi_reduction <maximumf>, %158, %cst_129 [0] : vector<5x8xf32> to vector<8xf32>
    %160 = vector.shape_cast %159 : vector<8xf32> to vector<1x8xf32>
    %161 = arith.maximumf %160, %0 : vector<1x8xf32>
    %162 = vector.extract_strided_slice %157 {offsets = [5, 0], sizes = [6, 8], strides = [1, 1]} : vector<16x8xf32> to vector<6x8xf32>
    %cst_130 = arith.constant dense<0xFF800000> : vector<8xf32>
    %163 = vector.multi_reduction <maximumf>, %162, %cst_130 [0] : vector<6x8xf32> to vector<8xf32>
    %164 = vector.shape_cast %163 : vector<8xf32> to vector<1x8xf32>
    %165 = vector.extract_strided_slice %157 {offsets = [11, 0], sizes = [5, 8], strides = [1, 1]} : vector<16x8xf32> to vector<5x8xf32>
    %cst_131 = arith.constant dense<0xFF800000> : vector<8xf32>
    %166 = vector.multi_reduction <maximumf>, %165, %cst_131 [0] : vector<5x8xf32> to vector<8xf32>
    %167 = vector.shape_cast %166 : vector<8xf32> to vector<1x8xf32>
    %168 = arith.maximumf %167, %0 : vector<1x8xf32>
    %169 = tpu.concatenate %161, %164, %168 in 0 : vector<1x8xf32>, vector<1x8xf32>, vector<1x8xf32> -> vector<3x8xf32>
    %c3_132 = arith.constant 3 : index
    %c0_133 = arith.constant 0 : index
    %170 = vector.load %arg4[%c3_132, %c0_133] : memref<9x8xf32, #tpu.memory_space<vmem>>, vector<3x8xf32>
    tpu.vector_store %arg4[%c3_132, %c0_133], %169 {strides = array<i32>} : memref<9x8xf32, #tpu.memory_space<vmem>>, vector<3x8xf32>,
    %c11_134 = arith.constant 11 : index
    %c0_135 = arith.constant 0 : index
    %c0_136 = arith.constant 0 : index
    %171 = vector.load %arg1[%c11_134, %c0_135, %c0_136] : memref<16x16x8xf32, #tpu.memory_space<vmem>>, vector<1x16x8xf32>
    %172 = vector.shape_cast %171 : vector<1x16x8xf32> to vector<16x8xf32>
    %c12_137 = arith.constant 12 : index
    %c0_138 = arith.constant 0 : index
    %c0_139 = arith.constant 0 : index
    %173 = vector.load %arg1[%c12_137, %c0_138, %c0_139] : memref<16x16x8xf32, #tpu.memory_space<vmem>>, vector<1x16x8xf32>
    %174 = vector.shape_cast %173 : vector<1x16x8xf32> to vector<16x8xf32>
    %175 = arith.maximumf %172, %174 : vector<16x8xf32>
    %c13_140 = arith.constant 13 : index
    %c0_141 = arith.constant 0 : index
    %c0_142 = arith.constant 0 : index
    %176 = vector.load %arg1[%c13_140, %c0_141, %c0_142] : memref<16x16x8xf32, #tpu.memory_space<vmem>>, vector<1x16x8xf32>
    %177 = vector.shape_cast %176 : vector<1x16x8xf32> to vector<16x8xf32>
    %178 = arith.maximumf %175, %177 : vector<16x8xf32>
    %c14_143 = arith.constant 14 : index
    %c0_144 = arith.constant 0 : index
    %c0_145 = arith.constant 0 : index
    %179 = vector.load %arg1[%c14_143, %c0_144, %c0_145] : memref<16x16x8xf32, #tpu.memory_space<vmem>>, vector<1x16x8xf32>
    %180 = vector.shape_cast %179 : vector<1x16x8xf32> to vector<16x8xf32>
    %181 = arith.maximumf %178, %180 : vector<16x8xf32>
    %c15_146 = arith.constant 15 : index
    %c0_147 = arith.constant 0 : index
    %c0_148 = arith.constant 0 : index
    %182 = vector.load %arg1[%c15_146, %c0_147, %c0_148] : memref<16x16x8xf32, #tpu.memory_space<vmem>>, vector<1x16x8xf32>
    %183 = vector.shape_cast %182 : vector<1x16x8xf32> to vector<16x8xf32>
    %184 = arith.maximumf %181, %183 : vector<16x8xf32>
    %185 = vector.extract_strided_slice %184 {offsets = [0, 0], sizes = [5, 8], strides = [1, 1]} : vector<16x8xf32> to vector<5x8xf32>
    %cst_149 = arith.constant dense<0xFF800000> : vector<8xf32>
    %186 = vector.multi_reduction <maximumf>, %185, %cst_149 [0] : vector<5x8xf32> to vector<8xf32>
    %187 = vector.shape_cast %186 : vector<8xf32> to vector<1x8xf32>
    %188 = arith.maximumf %187, %0 : vector<1x8xf32>
    %189 = vector.extract_strided_slice %184 {offsets = [5, 0], sizes = [6, 8], strides = [1, 1]} : vector<16x8xf32> to vector<6x8xf32>
    %cst_150 = arith.constant dense<0xFF800000> : vector<8xf32>
    %190 = vector.multi_reduction <maximumf>, %189, %cst_150 [0] : vector<6x8xf32> to vector<8xf32>
    %191 = vector.shape_cast %190 : vector<8xf32> to vector<1x8xf32>
    %192 = arith.maximumf %191, %0 : vector<1x8xf32>
    %193 = vector.extract_strided_slice %184 {offsets = [11, 0], sizes = [5, 8], strides = [1, 1]} : vector<16x8xf32> to vector<5x8xf32>
    %cst_151 = arith.constant dense<0xFF800000> : vector<8xf32>
    %194 = vector.multi_reduction <maximumf>, %193, %cst_151 [0] : vector<5x8xf32> to vector<8xf32>
    %195 = vector.shape_cast %194 : vector<8xf32> to vector<1x8xf32>
    %196 = arith.maximumf %195, %0 : vector<1x8xf32>
    %197 = tpu.concatenate %188, %192, %196 in 0 : vector<1x8xf32>, vector<1x8xf32>, vector<1x8xf32> -> vector<3x8xf32>
    %c6_152 = arith.constant 6 : index
    %c0_153 = arith.constant 0 : index
    %198 = vector.load %arg4[%c6_152, %c0_153] : memref<9x8xf32, #tpu.memory_space<vmem>>, vector<3x8xf32>
    tpu.vector_store %arg4[%c6_152, %c0_153], %197 {strides = array<i32>} : memref<9x8xf32, #tpu.memory_space<vmem>>, vector<3x8xf32>,
    %c0_154 = arith.constant 0 : index
    %c0_155 = arith.constant 0 : index
    %c0_156 = arith.constant 0 : index
    %199 = vector.load %arg1[%c0_154, %c0_155, %c0_156] : memref<16x16x8xf32, #tpu.memory_space<vmem>>, vector<1x16x8xf32>
    %200 = vector.shape_cast %199 : vector<1x16x8xf32> to vector<16x8xf32>
    %c1_157 = arith.constant 1 : index
    %c0_158 = arith.constant 0 : index
    %c0_159 = arith.constant 0 : index
    %201 = vector.load %arg1[%c1_157, %c0_158, %c0_159] : memref<16x16x8xf32, #tpu.memory_space<vmem>>, vector<1x16x8xf32>
    %202 = vector.shape_cast %201 : vector<1x16x8xf32> to vector<16x8xf32>
    %203 = arith.maximumf %200, %202 : vector<16x8xf32>
    %c2_160 = arith.constant 2 : index
    %c0_161 = arith.constant 0 : index
    %c0_162 = arith.constant 0 : index
    %204 = vector.load %arg1[%c2_160, %c0_161, %c0_162] : memref<16x16x8xf32, #tpu.memory_space<vmem>>, vector<1x16x8xf32>
    %205 = vector.shape_cast %204 : vector<1x16x8xf32> to vector<16x8xf32>
    %206 = arith.maximumf %203, %205 : vector<16x8xf32>
    %c3_163 = arith.constant 3 : index
    %c0_164 = arith.constant 0 : index
    %c0_165 = arith.constant 0 : index
    %207 = vector.load %arg1[%c3_163, %c0_164, %c0_165] : memref<16x16x8xf32, #tpu.memory_space<vmem>>, vector<1x16x8xf32>
    %208 = vector.shape_cast %207 : vector<1x16x8xf32> to vector<16x8xf32>
    %209 = arith.maximumf %206, %208 : vector<16x8xf32>
    %210 = vector.extract_strided_slice %209 {offsets = [0, 0], sizes = [4, 8], strides = [1, 1]} : vector<16x8xf32> to vector<4x8xf32>
    %cst_166 = arith.constant dense<0xFF800000> : vector<8xf32>
    %211 = vector.multi_reduction <maximumf>, %210, %cst_166 [0] : vector<4x8xf32> to vector<8xf32>
    %212 = vector.shape_cast %211 : vector<8xf32> to vector<1x8xf32>
    %213 = vector.extract_strided_slice %209 {offsets = [4, 0], sizes = [4, 8], strides = [1, 1]} : vector<16x8xf32> to vector<4x8xf32>
    %cst_167 = arith.constant dense<0xFF800000> : vector<8xf32>
    %214 = vector.multi_reduction <maximumf>, %213, %cst_167 [0] : vector<4x8xf32> to vector<8xf32>
    %215 = vector.shape_cast %214 : vector<8xf32> to vector<1x8xf32>
    %216 = vector.extract_strided_slice %209 {offsets = [8, 0], sizes = [4, 8], strides = [1, 1]} : vector<16x8xf32> to vector<4x8xf32>
    %cst_168 = arith.constant dense<0xFF800000> : vector<8xf32>
    %217 = vector.multi_reduction <maximumf>, %216, %cst_168 [0] : vector<4x8xf32> to vector<8xf32>
    %218 = vector.shape_cast %217 : vector<8xf32> to vector<1x8xf32>
    %219 = vector.extract_strided_slice %209 {offsets = [12, 0], sizes = [4, 8], strides = [1, 1]} : vector<16x8xf32> to vector<4x8xf32>
    %cst_169 = arith.constant dense<0xFF800000> : vector<8xf32>
    %220 = vector.multi_reduction <maximumf>, %219, %cst_169 [0] : vector<4x8xf32> to vector<8xf32>
    %221 = vector.shape_cast %220 : vector<8xf32> to vector<1x8xf32>
    %222 = tpu.concatenate %212, %215, %218, %221 in 0 : vector<1x8xf32>, vector<1x8xf32>, vector<1x8xf32>, vector<1x8xf32> -> vector<4x8xf32>
    %c0_170 = arith.constant 0 : index
    %c0_171 = arith.constant 0 : index
    %223 = vector.load %arg5[%c0_170, %c0_171] : memref<16x8xf32, #tpu.memory_space<vmem>>, vector<4x8xf32>
    tpu.vector_store %arg5[%c0_170, %c0_171], %222 {strides = array<i32>} : memref<16x8xf32, #tpu.memory_space<vmem>>, vector<4x8xf32>,
    %c4_172 = arith.constant 4 : index
    %c0_173 = arith.constant 0 : index
    %c0_174 = arith.constant 0 : index
    %224 = vector.load %arg1[%c4_172, %c0_173, %c0_174] : memref<16x16x8xf32, #tpu.memory_space<vmem>>, vector<1x16x8xf32>
    %225 = vector.shape_cast %224 : vector<1x16x8xf32> to vector<16x8xf32>
    %c5_175 = arith.constant 5 : index
    %c0_176 = arith.constant 0 : index
    %c0_177 = arith.constant 0 : index
    %226 = vector.load %arg1[%c5_175, %c0_176, %c0_177] : memref<16x16x8xf32, #tpu.memory_space<vmem>>, vector<1x16x8xf32>
    %227 = vector.shape_cast %226 : vector<1x16x8xf32> to vector<16x8xf32>
    %228 = arith.maximumf %225, %227 : vector<16x8xf32>
    %c6_178 = arith.constant 6 : index
    %c0_179 = arith.constant 0 : index
    %c0_180 = arith.constant 0 : index
    %229 = vector.load %arg1[%c6_178, %c0_179, %c0_180] : memref<16x16x8xf32, #tpu.memory_space<vmem>>, vector<1x16x8xf32>
    %230 = vector.shape_cast %229 : vector<1x16x8xf32> to vector<16x8xf32>
    %231 = arith.maximumf %228, %230 : vector<16x8xf32>
    %c7_181 = arith.constant 7 : index
    %c0_182 = arith.constant 0 : index
    %c0_183 = arith.constant 0 : index
    %232 = vector.load %arg1[%c7_181, %c0_182, %c0_183] : memref<16x16x8xf32, #tpu.memory_space<vmem>>, vector<1x16x8xf32>
    %233 = vector.shape_cast %232 : vector<1x16x8xf32> to vector<16x8xf32>
    %234 = arith.maximumf %231, %233 : vector<16x8xf32>
    %235 = vector.extract_strided_slice %234 {offsets = [0, 0], sizes = [4, 8], strides = [1, 1]} : vector<16x8xf32> to vector<4x8xf32>
    %cst_184 = arith.constant dense<0xFF800000> : vector<8xf32>
    %236 = vector.multi_reduction <maximumf>, %235, %cst_184 [0] : vector<4x8xf32> to vector<8xf32>
    %237 = vector.shape_cast %236 : vector<8xf32> to vector<1x8xf32>
    %238 = vector.extract_strided_slice %234 {offsets = [4, 0], sizes = [4, 8], strides = [1, 1]} : vector<16x8xf32> to vector<4x8xf32>
    %cst_185 = arith.constant dense<0xFF800000> : vector<8xf32>
    %239 = vector.multi_reduction <maximumf>, %238, %cst_185 [0] : vector<4x8xf32> to vector<8xf32>
    %240 = vector.shape_cast %239 : vector<8xf32> to vector<1x8xf32>
    %241 = vector.extract_strided_slice %234 {offsets = [8, 0], sizes = [4, 8], strides = [1, 1]} : vector<16x8xf32> to vector<4x8xf32>
    %cst_186 = arith.constant dense<0xFF800000> : vector<8xf32>
    %242 = vector.multi_reduction <maximumf>, %241, %cst_186 [0] : vector<4x8xf32> to vector<8xf32>
    %243 = vector.shape_cast %242 : vector<8xf32> to vector<1x8xf32>
    %244 = vector.extract_strided_slice %234 {offsets = [12, 0], sizes = [4, 8], strides = [1, 1]} : vector<16x8xf32> to vector<4x8xf32>
    %cst_187 = arith.constant dense<0xFF800000> : vector<8xf32>
    %245 = vector.multi_reduction <maximumf>, %244, %cst_187 [0] : vector<4x8xf32> to vector<8xf32>
    %246 = vector.shape_cast %245 : vector<8xf32> to vector<1x8xf32>
    %247 = tpu.concatenate %237, %240, %243, %246 in 0 : vector<1x8xf32>, vector<1x8xf32>, vector<1x8xf32>, vector<1x8xf32> -> vector<4x8xf32>
    %c4_188 = arith.constant 4 : index
    %c0_189 = arith.constant 0 : index
    %248 = vector.load %arg5[%c4_188, %c0_189] : memref<16x8xf32, #tpu.memory_space<vmem>>, vector<4x8xf32>
    tpu.vector_store %arg5[%c4_188, %c0_189], %247 {strides = array<i32>} : memref<16x8xf32, #tpu.memory_space<vmem>>, vector<4x8xf32>,
    %c8_190 = arith.constant 8 : index
    %c0_191 = arith.constant 0 : index
    %c0_192 = arith.constant 0 : index
    %249 = vector.load %arg1[%c8_190, %c0_191, %c0_192] : memref<16x16x8xf32, #tpu.memory_space<vmem>>, vector<1x16x8xf32>
    %250 = vector.shape_cast %249 : vector<1x16x8xf32> to vector<16x8xf32>
    %c9_193 = arith.constant 9 : index
    %c0_194 = arith.constant 0 : index
    %c0_195 = arith.constant 0 : index
    %251 = vector.load %arg1[%c9_193, %c0_194, %c0_195] : memref<16x16x8xf32, #tpu.memory_space<vmem>>, vector<1x16x8xf32>
    %252 = vector.shape_cast %251 : vector<1x16x8xf32> to vector<16x8xf32>
    %253 = arith.maximumf %250, %252 : vector<16x8xf32>
    %c10_196 = arith.constant 10 : index
    %c0_197 = arith.constant 0 : index
    %c0_198 = arith.constant 0 : index
    %254 = vector.load %arg1[%c10_196, %c0_197, %c0_198] : memref<16x16x8xf32, #tpu.memory_space<vmem>>, vector<1x16x8xf32>
    %255 = vector.shape_cast %254 : vector<1x16x8xf32> to vector<16x8xf32>
    %256 = arith.maximumf %253, %255 : vector<16x8xf32>
    %c11_199 = arith.constant 11 : index
    %c0_200 = arith.constant 0 : index
    %c0_201 = arith.constant 0 : index
    %257 = vector.load %arg1[%c11_199, %c0_200, %c0_201] : memref<16x16x8xf32, #tpu.memory_space<vmem>>, vector<1x16x8xf32>
    %258 = vector.shape_cast %257 : vector<1x16x8xf32> to vector<16x8xf32>
    %259 = arith.maximumf %256, %258 : vector<16x8xf32>
    %260 = vector.extract_strided_slice %259 {offsets = [0, 0], sizes = [4, 8], strides = [1, 1]} : vector<16x8xf32> to vector<4x8xf32>
    %cst_202 = arith.constant dense<0xFF800000> : vector<8xf32>
    %261 = vector.multi_reduction <maximumf>, %260, %cst_202 [0] : vector<4x8xf32> to vector<8xf32>
    %262 = vector.shape_cast %261 : vector<8xf32> to vector<1x8xf32>
    %263 = vector.extract_strided_slice %259 {offsets = [4, 0], sizes = [4, 8], strides = [1, 1]} : vector<16x8xf32> to vector<4x8xf32>
    %cst_203 = arith.constant dense<0xFF800000> : vector<8xf32>
    %264 = vector.multi_reduction <maximumf>, %263, %cst_203 [0] : vector<4x8xf32> to vector<8xf32>
    %265 = vector.shape_cast %264 : vector<8xf32> to vector<1x8xf32>
    %266 = vector.extract_strided_slice %259 {offsets = [8, 0], sizes = [4, 8], strides = [1, 1]} : vector<16x8xf32> to vector<4x8xf32>
    %cst_204 = arith.constant dense<0xFF800000> : vector<8xf32>
    %267 = vector.multi_reduction <maximumf>, %266, %cst_204 [0] : vector<4x8xf32> to vector<8xf32>
    %268 = vector.shape_cast %267 : vector<8xf32> to vector<1x8xf32>
    %269 = vector.extract_strided_slice %259 {offsets = [12, 0], sizes = [4, 8], strides = [1, 1]} : vector<16x8xf32> to vector<4x8xf32>
    %cst_205 = arith.constant dense<0xFF800000> : vector<8xf32>
    %270 = vector.multi_reduction <maximumf>, %269, %cst_205 [0] : vector<4x8xf32> to vector<8xf32>
    %271 = vector.shape_cast %270 : vector<8xf32> to vector<1x8xf32>
    %272 = tpu.concatenate %262, %265, %268, %271 in 0 : vector<1x8xf32>, vector<1x8xf32>, vector<1x8xf32>, vector<1x8xf32> -> vector<4x8xf32>
    %c8_206 = arith.constant 8 : index
    %c0_207 = arith.constant 0 : index
    %273 = vector.load %arg5[%c8_206, %c0_207] : memref<16x8xf32, #tpu.memory_space<vmem>>, vector<4x8xf32>
    tpu.vector_store %arg5[%c8_206, %c0_207], %272 {strides = array<i32>} : memref<16x8xf32, #tpu.memory_space<vmem>>, vector<4x8xf32>,
    %c12_208 = arith.constant 12 : index
    %c0_209 = arith.constant 0 : index
    %c0_210 = arith.constant 0 : index
    %274 = vector.load %arg1[%c12_208, %c0_209, %c0_210] : memref<16x16x8xf32, #tpu.memory_space<vmem>>, vector<1x16x8xf32>
    %275 = vector.shape_cast %274 : vector<1x16x8xf32> to vector<16x8xf32>
    %c13_211 = arith.constant 13 : index
    %c0_212 = arith.constant 0 : index
    %c0_213 = arith.constant 0 : index
    %276 = vector.load %arg1[%c13_211, %c0_212, %c0_213] : memref<16x16x8xf32, #tpu.memory_space<vmem>>, vector<1x16x8xf32>
    %277 = vector.shape_cast %276 : vector<1x16x8xf32> to vector<16x8xf32>
    %278 = arith.maximumf %275, %277 : vector<16x8xf32>
    %c14_214 = arith.constant 14 : index
    %c0_215 = arith.constant 0 : index
    %c0_216 = arith.constant 0 : index
    %279 = vector.load %arg1[%c14_214, %c0_215, %c0_216] : memref<16x16x8xf32, #tpu.memory_space<vmem>>, vector<1x16x8xf32>
    %280 = vector.shape_cast %279 : vector<1x16x8xf32> to vector<16x8xf32>
    %281 = arith.maximumf %278, %280 : vector<16x8xf32>
    %c15_217 = arith.constant 15 : index
    %c0_218 = arith.constant 0 : index
    %c0_219 = arith.constant 0 : index
    %282 = vector.load %arg1[%c15_217, %c0_218, %c0_219] : memref<16x16x8xf32, #tpu.memory_space<vmem>>, vector<1x16x8xf32>
    %283 = vector.shape_cast %282 : vector<1x16x8xf32> to vector<16x8xf32>
    %284 = arith.maximumf %281, %283 : vector<16x8xf32>
    %285 = vector.extract_strided_slice %284 {offsets = [0, 0], sizes = [4, 8], strides = [1, 1]} : vector<16x8xf32> to vector<4x8xf32>
    %cst_220 = arith.constant dense<0xFF800000> : vector<8xf32>
    %286 = vector.multi_reduction <maximumf>, %285, %cst_220 [0] : vector<4x8xf32> to vector<8xf32>
    %287 = vector.shape_cast %286 : vector<8xf32> to vector<1x8xf32>
    %288 = vector.extract_strided_slice %284 {offsets = [4, 0], sizes = [4, 8], strides = [1, 1]} : vector<16x8xf32> to vector<4x8xf32>
    %cst_221 = arith.constant dense<0xFF800000> : vector<8xf32>
    %289 = vector.multi_reduction <maximumf>, %288, %cst_221 [0] : vector<4x8xf32> to vector<8xf32>
    %290 = vector.shape_cast %289 : vector<8xf32> to vector<1x8xf32>
    %291 = vector.extract_strided_slice %284 {offsets = [8, 0], sizes = [4, 8], strides = [1, 1]} : vector<16x8xf32> to vector<4x8xf32>
    %cst_222 = arith.constant dense<0xFF800000> : vector<8xf32>
    %292 = vector.multi_reduction <maximumf>, %291, %cst_222 [0] : vector<4x8xf32> to vector<8xf32>
    %293 = vector.shape_cast %292 : vector<8xf32> to vector<1x8xf32>
    %294 = vector.extract_strided_slice %284 {offsets = [12, 0], sizes = [4, 8], strides = [1, 1]} : vector<16x8xf32> to vector<4x8xf32>
    %cst_223 = arith.constant dense<0xFF800000> : vector<8xf32>
    %295 = vector.multi_reduction <maximumf>, %294, %cst_223 [0] : vector<4x8xf32> to vector<8xf32>
    %296 = vector.shape_cast %295 : vector<8xf32> to vector<1x8xf32>
    %297 = tpu.concatenate %287, %290, %293, %296 in 0 : vector<1x8xf32>, vector<1x8xf32>, vector<1x8xf32>, vector<1x8xf32> -> vector<4x8xf32>
    %c12_224 = arith.constant 12 : index
    %c0_225 = arith.constant 0 : index
    %298 = vector.load %arg5[%c12_224, %c0_225] : memref<16x8xf32, #tpu.memory_space<vmem>>, vector<4x8xf32>
    tpu.vector_store %arg5[%c12_224, %c0_225], %297 {strides = array<i32>} : memref<16x8xf32, #tpu.memory_space<vmem>>, vector<4x8xf32>,
    return
  }
  func.func @transform_0(%arg0: i32) -> (i32, i32, i32) {
    %c0_i32 = arith.constant 0 : i32
    %c0_i32_0 = arith.constant 0 : i32
    %c0_i32_1 = arith.constant 0 : i32
    return %c0_i32, %c0_i32_0, %arg0 : i32, i32, i32
  }
  func.func @transform_1(%arg0: i32) -> (i32, i32) {
    %c0_i32 = arith.constant 0 : i32
    %c0_i32_0 = arith.constant 0 : i32
    return %c0_i32, %arg0 : i32, i32
  }
  func.func @transform_2(%arg0: i32) -> (i32, i32) {
    %c0_i32 = arith.constant 0 : i32
    %c0_i32_0 = arith.constant 0 : i32
    return %c0_i32, %arg0 : i32, i32
  }
  func.func @transform_3(%arg0: i32) -> (i32, i32) {
    %c0_i32 = arith.constant 0 : i32
    %c0_i32_0 = arith.constant 0 : i32
    return %c0_i32, %arg0 : i32, i32
  }
  func.func @transform_4(%arg0: i32) -> (i32, i32) {
    %c0_i32 = arith.constant 0 : i32
    %c0_i32_0 = arith.constant 0 : i32
    return %c0_i32, %arg0 : i32, i32
  }
}

</mosaic_0001>

<llo_original>
// kernel: tpu_custom_call.1
$region0: #{tpu_custom_call.1}
  #allocation0 [shape = 'u32[]', space=smem, size = 0x4, offset = 0x4, fixed_abs, tag = 'smem constant byte address 0x4 - core index']
  #allocation1 [shape = 'u32[144,128]{1,0:T(1,128)}', space=vmem, size = 0x12000, scoped, tag = 'internal scratch']
  %s0 = inlined_call_operand.vmem [shape: f32[16,16,8], index: 0, kind: input, shape index: {}]
  %s1 = inlined_call_operand.hbm [shape: f32[1,8], index: 1, kind: output, shape index: {0}]
  %s2 = inlined_call_operand.hbm [shape: f32[4,8], index: 2, kind: output, shape index: {1}]
  %s3 = inlined_call_operand.vmem [shape: f32[9,8], index: 3, kind: output, shape index: {2}]
  %s4 = inlined_call_operand.vmem [shape: f32[16,8], index: 4, kind: output, shape index: {3}]
  %5 = xla_tuple %s1, %s2, %s3, %s4
  %s6 = sld [smem:[#allocation0]]
  $region38: #{tpu_custom_call.1} parent=0
    _
  %s8 = ssub.s32 1, %s6
  %s9 = scalar_select 0, %s8, %s6
  $region1: #{tpu_custom_call.1} parent=0
    #allocation2 [shape = 'u8[512]{0}', space=vmem, size = 0x400, scoped, tag = 'output window, operand 0, single buffered']
    #allocation3 [shape = 's32[1]{0}', space=sflag, size = 0x4, scoped, tag = 'scoped memory for tpu_custom_call.1']
    #allocation4 [shape = 'u8[2048]{0}', space=vmem, size = 0x800, scoped, tag = 'output window, operand 1, single buffered']
    #allocation5 [shape = 's32[1]{0}', space=sflag, size = 0x4, scoped, tag = 'scoped memory for tpu_custom_call.1']
    %10 = vsyncpa [#allocation3], 0
    %11 = vsyncpa [#allocation5], 0
    // Predicated region
    $region2: #{tpu_custom_call.1} parent=1 // pred_check
      _
    $region3: #{tpu_custom_call.1} parent=1 // pred_check_branch
      %13 = sbr.rel (0) target = $region5
    $region4: #{tpu_custom_call.1} parent=1 // pred_region
      _
    $region5: #{tpu_custom_call.1} parent=1 // pred_fallthru
      _
    %v14 = vld [vmem:[%s0] sm:$0xff]
    %v15 = vld [vmem:[%s0 + $0x8] sm:$0xff]
    %s16 = scalar_lea.vmem %s0, 16
    %v17 = vld [vmem:[%s16] sm:$0xff]
    %v18 = vld [vmem:[%s16 + $0x8] sm:$0xff]
    %v19 = vmax.f32 %v14, %v17
    %v20 = vmax.f32 %v15, %v18
    %s21 = scalar_lea.vmem %s0, 32
    %v22 = vld [vmem:[%s21] sm:$0xff]
    %v23 = vld [vmem:[%s21 + $0x8] sm:$0xff]
    %v24 = vmax.f32 %v19, %v22
    %v25 = vmax.f32 %v20, %v23
    %s26 = scalar_lea.vmem %s0, 48
    %v27 = vld [vmem:[%s26] sm:$0xff]
    %v28 = vld [vmem:[%s26 + $0x8] sm:$0xff]
    %v29 = vmax.f32 %v24, %v27
    %v30 = vmax.f32 %v25, %v28
    %s31 = scalar_lea.vmem %s0, 64
    %v32 = vld [vmem:[%s31] sm:$0xff]
    %v33 = vld [vmem:[%s31 + $0x8] sm:$0xff]
    %v34 = vmax.f32 %v29, %v32
    %v35 = vmax.f32 %v30, %v33
    %s36 = scalar_lea.vmem %s0, 80
    %v37 = vld [vmem:[%s36] sm:$0xff]
    %v38 = vld [vmem:[%s36 + $0x8] sm:$0xff]
    %v39 = vmax.f32 %v34, %v37
    %v40 = vmax.f32 %v35, %v38
    %s41 = scalar_lea.vmem %s0, 96
    %v42 = vld [vmem:[%s41] sm:$0xff]
    %v43 = vld [vmem:[%s41 + $0x8] sm:$0xff]
    %v44 = vmax.f32 %v39, %v42
    %v45 = vmax.f32 %v40, %v43
    %s46 = scalar_lea.vmem %s0, 112
    %v47 = vld [vmem:[%s46] sm:$0xff]
    %v48 = vld [vmem:[%s46 + $0x8] sm:$0xff]
    %v49 = vmax.f32 %v44, %v47
    %v50 = vmax.f32 %v45, %v48
    %s51 = scalar_lea.vmem %s0, 128
    %v52 = vld [vmem:[%s51] sm:$0xff]
    %v53 = vld [vmem:[%s51 + $0x8] sm:$0xff]
    %v54 = vmax.f32 %v49, %v52
    %v55 = vmax.f32 %v50, %v53
    %s56 = scalar_lea.vmem %s0, 144
    %v57 = vld [vmem:[%s56] sm:$0xff]
    %v58 = vld [vmem:[%s56 + $0x8] sm:$0xff]
    %v59 = vmax.f32 %v54, %v57
    %v60 = vmax.f32 %v55, %v58
    %s61 = scalar_lea.vmem %s0, 160
    %v62 = vld [vmem:[%s61] sm:$0xff]
    %v63 = vld [vmem:[%s61 + $0x8] sm:$0xff]
    %v64 = vmax.f32 %v59, %v62
    %v65 = vmax.f32 %v60, %v63
    %s66 = scalar_lea.vmem %s0, 176
    %v67 = vld [vmem:[%s66] sm:$0xff]
    %v68 = vld [vmem:[%s66 + $0x8] sm:$0xff]
    %v69 = vmax.f32 %v64, %v67
    %v70 = vmax.f32 %v65, %v68
    %s71 = scalar_lea.vmem %s0, 192
    %v72 = vld [vmem:[%s71] sm:$0xff]
    %v73 = vld [vmem:[%s71 + $0x8] sm:$0xff]
    %v74 = vmax.f32 %v69, %v72
    %v75 = vmax.f32 %v70, %v73
    %s76 = scalar_lea.vmem %s0, 208
    %v77 = vld [vmem:[%s76] sm:$0xff]
    %v78 = vld [vmem:[%s76 + $0x8] sm:$0xff]
    %v79 = vmax.f32 %v74, %v77
    %v80 = vmax.f32 %v75, %v78
    %s81 = scalar_lea.vmem %s0, 224
    %v82 = vld [vmem:[%s81] sm:$0xff]
    %v83 = vld [vmem:[%s81 + $0x8] sm:$0xff]
    %v84 = vmax.f32 %v79, %v82
    %v85 = vmax.f32 %v80, %v83
    %s86 = scalar_lea.vmem %s0, 240
    %v87 = vld [vmem:[%s86] sm:$0xff]
    %v88 = vld [vmem:[%s86 + $0x8] sm:$0xff]
    %v89 = vmax.f32 %v84, %v87
    %v90 = vmax.f32 %v85, %v88
    %vm91 = vcmask 64512
    %v92 = vsel %vm91, %v89, -inf
    %v93 = vsel %vm91, %v90, -inf
    %v94 = vmax.f32 %v92, %v93
    %v95 = vrot.slane %v94, 4
    %v96 = vmax.f32 %v94, %v95
    %v97 = vrot.slane %v96, 2
    %v98 = vmax.f32 %v96, %v97
    %v99 = vrot.slane %v98, 1
    %v100 = vmax.f32 %v98, %v99
    %vm101 = vcmask 57344
    %102 = vst.msk [vmem:[#allocation2] sm:$0x1] %vm101, %v100
    %v103 = vld [vmem:[%s0] sm:$0xff]
    %v104 = vld [vmem:[%s0 + $0x8] sm:$0xff]
    %v105 = vld [vmem:[%s16] sm:$0xff]
    %v106 = vld [vmem:[%s16 + $0x8] sm:$0xff]
    %v107 = vmax.f32 %v103, %v105
    %v108 = vmax.f32 %v104, %v106
    %v109 = vld [vmem:[%s21] sm:$0xff]
    %v110 = vld [vmem:[%s21 + $0x8] sm:$0xff]
    %v111 = vmax.f32 %v107, %v109
    %v112 = vmax.f32 %v108, %v110
    %v113 = vld [vmem:[%s26] sm:$0xff]
    %v114 = vld [vmem:[%s26 + $0x8] sm:$0xff]
    %v115 = vmax.f32 %v111, %v113
    %v116 = vmax.f32 %v112, %v114
    %v117 = vld [vmem:[%s31] sm:$0xff]
    %v118 = vld [vmem:[%s31 + $0x8] sm:$0xff]
    %v119 = vmax.f32 %v115, %v117
    %v120 = vmax.f32 %v116, %v118
    %v121 = vld [vmem:[%s36] sm:$0xff]
    %v122 = vld [vmem:[%s36 + $0x8] sm:$0xff]
    %v123 = vmax.f32 %v119, %v121
    %v124 = vmax.f32 %v120, %v122
    %v125 = vld [vmem:[%s41] sm:$0xff]
    %v126 = vld [vmem:[%s41 + $0x8] sm:$0xff]
    %v127 = vmax.f32 %v123, %v125
    %v128 = vmax.f32 %v124, %v126
    %v129 = vld [vmem:[%s46] sm:$0xff]
    %v130 = vld [vmem:[%s46 + $0x8] sm:$0xff]
    %v131 = vmax.f32 %v127, %v129
    %v132 = vmax.f32 %v128, %v130
    %v133 = vsel %vm91, %v131, -inf
    %v134 = vrot.slane %v133, 4
    %v135 = vmax.f32 %v133, %v134
    %v136 = vrot.slane %v135, 2
    %v137 = vmax.f32 %v135, %v136
    %v138 = vrot.slane %v137, 1
    %v139 = vmax.f32 %v137, %v138
    %v140 = vsel %vm91, %v132, -inf
    %v141 = vrot.slane %v140, 4
    %v142 = vmax.f32 %v140, %v141
    %v143 = vrot.slane %v142, 2
    %v144 = vmax.f32 %v142, %v143
    %v145 = vrot.slane %v144, 1
    %v146 = vmax.f32 %v144, %v145
    %vm147 = vcmask 1040384
    %v148 = vsel %vm147, %v139, %v146
    %vm149 = vcmask 58368
    %150 = vst.msk [vmem:[#allocation4] sm:$0x3] %vm149, %v148
    %v151 = vld [vmem:[%s51] sm:$0xff]
    %v152 = vld [vmem:[%s51 + $0x8] sm:$0xff]
    %v153 = vld [vmem:[%s56] sm:$0xff]
    %v154 = vld [vmem:[%s56 + $0x8] sm:$0xff]
    %v155 = vmax.f32 %v151, %v153
    %v156 = vmax.f32 %v152, %v154
    %v157 = vld [vmem:[%s61] sm:$0xff]
    %v158 = vld [vmem:[%s61 + $0x8] sm:$0xff]
    %v159 = vmax.f32 %v155, %v157
    %v160 = vmax.f32 %v156, %v158
    %v161 = vld [vmem:[%s66] sm:$0xff]
    %v162 = vld [vmem:[%s66 + $0x8] sm:$0xff]
    %v163 = vmax.f32 %v159, %v161
    %v164 = vmax.f32 %v160, %v162
    %v165 = vld [vmem:[%s71] sm:$0xff]
    %v166 = vld [vmem:[%s71 + $0x8] sm:$0xff]
    %v167 = vmax.f32 %v163, %v165
    %v168 = vmax.f32 %v164, %v166
    %v169 = vld [vmem:[%s76] sm:$0xff]
    %v170 = vld [vmem:[%s76 + $0x8] sm:$0xff]
    %v171 = vmax.f32 %v167, %v169
    %v172 = vmax.f32 %v168, %v170
    %v173 = vld [vmem:[%s81] sm:$0xff]
    %v174 = vld [vmem:[%s81 + $0x8] sm:$0xff]
    %v175 = vmax.f32 %v171, %v173
    %v176 = vmax.f32 %v172, %v174
    %v177 = vld [vmem:[%s86] sm:$0xff]
    %v178 = vld [vmem:[%s86 + $0x8] sm:$0xff]
    %v179 = vmax.f32 %v175, %v177
    %v180 = vmax.f32 %v176, %v178
    %v181 = vsel %vm91, %v179, -inf
    %v182 = vrot.slane %v181, 4
    %v183 = vmax.f32 %v181, %v182
    %v184 = vrot.slane %v183, 2
    %v185 = vmax.f32 %v183, %v184
    %v186 = vrot.slane %v185, 1
    %v187 = vmax.f32 %v185, %v186
    %v188 = vsel %vm91, %v180, -inf
    %v189 = vrot.slane %v188, 4
    %v190 = vmax.f32 %v188, %v189
    %v191 = vrot.slane %v190, 2
    %v192 = vmax.f32 %v190, %v191
    %v193 = vrot.slane %v192, 1
    %v194 = vmax.f32 %v192, %v193
    %v195 = vsel %vm147, %v187, %v194
    %196 = vst.msk [vmem:[#allocation4 + $0x2] sm:$0x3] %vm149, %v195
    %v197 = vld [vmem:[%s0] sm:$0xff]
    %v198 = vld [vmem:[%s0 + $0x8] sm:$0xff]
    %v199 = vld [vmem:[%s16] sm:$0xff]
    %v200 = vld [vmem:[%s16 + $0x8] sm:$0xff]
    %v201 = vmax.f32 %v197, %v199
    %v202 = vmax.f32 %v198, %v200
    %v203 = vld [vmem:[%s21] sm:$0xff]
    %v204 = vld [vmem:[%s21 + $0x8] sm:$0xff]
    %v205 = vmax.f32 %v201, %v203
    %v206 = vmax.f32 %v202, %v204
    %v207 = vld [vmem:[%s26] sm:$0xff]
    %v208 = vld [vmem:[%s26 + $0x8] sm:$0xff]
    %v209 = vmax.f32 %v205, %v207
    %v210 = vmax.f32 %v206, %v208
    %v211 = vld [vmem:[%s31] sm:$0xff]
    %v212 = vld [vmem:[%s31 + $0x8] sm:$0xff]
    %v213 = vmax.f32 %v209, %v211
    %v214 = vmax.f32 %v210, %v212
    %vm215 = vcmask 61440
    %v216 = vsel %vm215, %v213, -inf
    %v217 = vrot.slane %v216, 4
    %v218 = vmax.f32 %v216, %v217
    %v219 = vrot.slane %v218, 2
    %v220 = vmax.f32 %v218, %v219
    %v221 = vrot.slane %v220, 1
    %v222 = vmax.f32 %v220, %v221
    %v223 = vmax.f32 %v222, 0.0
    %vm224 = vcmask 64517
    %v225 = vsel %vm224, %v213, -inf
    %vm226 = vcmask 59392
    %v227 = vsel %vm226, %v214, -inf
    %v228 = vmax.f32 %v225, %v227
    %v229 = vrot.slane %v228, 4
    %v230 = vmax.f32 %v228, %v229
    %v231 = vrot.slane %v230, 2
    %v232 = vmax.f32 %v230, %v231
    %v233 = vrot.slane %v232, 1
    %v234 = vmax.f32 %v232, %v233
    %v235 = vmax.f32 %v234, 0.0
    %vm236 = vcmask 64515
    %v237 = vsel %vm236, %v214, -inf
    %v238 = vrot.slane %v237, 4
    %v239 = vmax.f32 %v237, %v238
    %v240 = vrot.slane %v239, 2
    %v241 = vmax.f32 %v239, %v240
    %v242 = vrot.slane %v241, 1
    %v243 = vmax.f32 %v241, %v242
    %v244 = vmax.f32 %v243, 0.0
    %v245 = vsel %vm147, %v223, %v235
    %vm246 = vcmask 1041408
    %v247 = vsel %vm246, %v245, %v244
    %248 = vst.msk [vmem:[%s3] sm:$0x7] %vm226, %v247
    %v249 = vld [vmem:[%s36] sm:$0xff]
    %v250 = vld [vmem:[%s36 + $0x8] sm:$0xff]
    %v251 = vld [vmem:[%s41] sm:$0xff]
    %v252 = vld [vmem:[%s41 + $0x8] sm:$0xff]
    %v253 = vmax.f32 %v249, %v251
    %v254 = vmax.f32 %v250, %v252
    %v255 = vld [vmem:[%s46] sm:$0xff]
    %v256 = vld [vmem:[%s46 + $0x8] sm:$0xff]
    %v257 = vmax.f32 %v253, %v255
    %v258 = vmax.f32 %v254, %v256
    %v259 = vld [vmem:[%s51] sm:$0xff]
    %v260 = vld [vmem:[%s51 + $0x8] sm:$0xff]
    %v261 = vmax.f32 %v257, %v259
    %v262 = vmax.f32 %v258, %v260
    %v263 = vld [vmem:[%s56] sm:$0xff]
    %v264 = vld [vmem:[%s56 + $0x8] sm:$0xff]
    %v265 = vmax.f32 %v261, %v263
    %v266 = vmax.f32 %v262, %v264
    %v267 = vld [vmem:[%s61] sm:$0xff]
    %v268 = vld [vmem:[%s61 + $0x8] sm:$0xff]
    %v269 = vmax.f32 %v265, %v267
    %v270 = vmax.f32 %v266, %v268
    %v271 = vsel %vm215, %v269, -inf
    %v272 = vrot.slane %v271, 4
    %v273 = vmax.f32 %v271, %v272
    %v274 = vrot.slane %v273, 2
    %v275 = vmax.f32 %v273, %v274
    %v276 = vrot.slane %v275, 1
    %v277 = vmax.f32 %v275, %v276
    %v278 = vmax.f32 %v277, 0.0
    %v279 = vsel %vm224, %v269, -inf
    %v280 = vsel %vm226, %v270, -inf
    %v281 = vmax.f32 %v279, %v280
    %v282 = vrot.slane %v281, 4
    %v283 = vmax.f32 %v281, %v282
    %v284 = vrot.slane %v283, 2
    %v285 = vmax.f32 %v283, %v284
    %v286 = vrot.slane %v285, 1
    %v287 = vmax.f32 %v285, %v286
    %v288 = vsel %vm236, %v270, -inf
    %v289 = vrot.slane %v288, 4
    %v290 = vmax.f32 %v288, %v289
    %v291 = vrot.slane %v290, 2
    %v292 = vmax.f32 %v290, %v291
    %v293 = vrot.slane %v292, 1
    %v294 = vmax.f32 %v292, %v293
    %v295 = vmax.f32 %v294, 0.0
    %v296 = vsel %vm147, %v278, %v287
    %v297 = vsel %vm246, %v296, %v295
    %298 = vst.msk [vmem:[%s3 + $0x3] sm:$0x7] %vm226, %v297
    %v299 = vld [vmem:[%s66] sm:$0xff]
    %v300 = vld [vmem:[%s66 + $0x8] sm:$0xff]
    %v301 = vld [vmem:[%s71] sm:$0xff]
    %v302 = vld [vmem:[%s71 + $0x8] sm:$0xff]
    %v303 = vmax.f32 %v299, %v301
    %v304 = vmax.f32 %v300, %v302
    %v305 = vld [vmem:[%s76] sm:$0xff]
    %v306 = vld [vmem:[%s76 + $0x8] sm:$0xff]
    %v307 = vmax.f32 %v303, %v305
    %v308 = vmax.f32 %v304, %v306
    %v309 = vld [vmem:[%s81] sm:$0xff]
    %v310 = vld [vmem:[%s81 + $0x8] sm:$0xff]
    %v311 = vmax.f32 %v307, %v309
    %v312 = vmax.f32 %v308, %v310
    %v313 = vld [vmem:[%s86] sm:$0xff]
    %v314 = vld [vmem:[%s86 + $0x8] sm:$0xff]
    %v315 = vmax.f32 %v311, %v313
    %v316 = vmax.f32 %v312, %v314
    %v317 = vsel %vm215, %v315, -inf
    %v318 = vrot.slane %v317, 4
    %v319 = vmax.f32 %v317, %v318
    %v320 = vrot.slane %v319, 2
    %v321 = vmax.f32 %v319, %v320
    %v322 = vrot.slane %v321, 1
    %v323 = vmax.f32 %v321, %v322
    %v324 = vmax.f32 %v323, 0.0
    %v325 = vsel %vm224, %v315, -inf
    %v326 = vsel %vm226, %v316, -inf
    %v327 = vmax.f32 %v325, %v326
    %v328 = vrot.slane %v327, 4
    %v329 = vmax.f32 %v327, %v328
    %v330 = vrot.slane %v329, 2
    %v331 = vmax.f32 %v329, %v330
    %v332 = vrot.slane %v331, 1
    %v333 = vmax.f32 %v331, %v332
    %v334 = vmax.f32 %v333, 0.0
    %v335 = vsel %vm236, %v316, -inf
    %v336 = vrot.slane %v335, 4
    %v337 = vmax.f32 %v335, %v336
    %v338 = vrot.slane %v337, 2
    %v339 = vmax.f32 %v337, %v338
    %v340 = vrot.slane %v339, 1
    %v341 = vmax.f32 %v339, %v340
    %v342 = vmax.f32 %v341, 0.0
    %v343 = vsel %vm147, %v324, %v334
    %v344 = vsel %vm246, %v343, %v342
    %345 = vst.msk [vmem:[%s3 + $0x6] sm:$0x7] %vm226, %v344
    %v346 = vld [vmem:[%s0] sm:$0xff]
    %v347 = vld [vmem:[%s0 + $0x8] sm:$0xff]
    %v348 = vld [vmem:[%s16] sm:$0xff]
    %v349 = vld [vmem:[%s16 + $0x8] sm:$0xff]
    %v350 = vmax.f32 %v346, %v348
    %v351 = vmax.f32 %v347, %v349
    %v352 = vld [vmem:[%s21] sm:$0xff]
    %v353 = vld [vmem:[%s21 + $0x8] sm:$0xff]
    %v354 = vmax.f32 %v350, %v352
    %v355 = vmax.f32 %v351, %v353
    %v356 = vld [vmem:[%s26] sm:$0xff]
    %v357 = vld [vmem:[%s26 + $0x8] sm:$0xff]
    %v358 = vmax.f32 %v354, %v356
    %v359 = vmax.f32 %v355, %v357
    %vm360 = vcmask 60416
    %v361 = vsel %vm360, %v358, -inf
    %v362 = vrot.slane %v361, 4
    %v363 = vmax.f32 %v361, %v362
    %v364 = vrot.slane %v363, 2
    %v365 = vmax.f32 %v363, %v364
    %v366 = vrot.slane %v365, 1
    %v367 = vmax.f32 %v365, %v366
    %vm368 = vcmask 64516
    %v369 = vsel %vm368, %v358, -inf
    %v370 = vrot.slane %v369, 4
    %v371 = vmax.f32 %v369, %v370
    %v372 = vrot.slane %v371, 2
    %v373 = vmax.f32 %v371, %v372
    %v374 = vrot.slane %v373, 1
    %v375 = vmax.f32 %v373, %v374
    %v376 = vsel %vm360, %v359, -inf
    %v377 = vrot.slane %v376, 4
    %v378 = vmax.f32 %v376, %v377
    %v379 = vrot.slane %v378, 2
    %v380 = vmax.f32 %v378, %v379
    %v381 = vrot.slane %v380, 1
    %v382 = vmax.f32 %v380, %v381
    %v383 = vsel %vm368, %v359, -inf
    %v384 = vrot.slane %v383, 4
    %v385 = vmax.f32 %v383, %v384
    %v386 = vrot.slane %v385, 2
    %v387 = vmax.f32 %v385, %v386
    %v388 = vrot.slane %v387, 1
    %v389 = vmax.f32 %v387, %v388
    %v390 = vsel %vm147, %v367, %v375
    %v391 = vsel %vm246, %v390, %v382
    %vm392 = vcmask 1042432
    %v393 = vsel %vm392, %v391, %v389
    %394 = vst.msk [vmem:[%s4] sm:$0xf] %vm360, %v393
    %v395 = vld [vmem:[%s31] sm:$0xff]
    %v396 = vld [vmem:[%s31 + $0x8] sm:$0xff]
    %v397 = vld [vmem:[%s36] sm:$0xff]
    %v398 = vld [vmem:[%s36 + $0x8] sm:$0xff]
    %v399 = vmax.f32 %v395, %v397
    %v400 = vmax.f32 %v396, %v398
    %v401 = vld [vmem:[%s41] sm:$0xff]
    %v402 = vld [vmem:[%s41 + $0x8] sm:$0xff]
    %v403 = vmax.f32 %v399, %v401
    %v404 = vmax.f32 %v400, %v402
    %v405 = vld [vmem:[%s46] sm:$0xff]
    %v406 = vld [vmem:[%s46 + $0x8] sm:$0xff]
    %v407 = vmax.f32 %v403, %v405
    %v408 = vmax.f32 %v404, %v406
    %v409 = vsel %vm360, %v407, -inf
    %v410 = vrot.slane %v409, 4
    %v411 = vmax.f32 %v409, %v410
    %v412 = vrot.slane %v411, 2
    %v413 = vmax.f32 %v411, %v412
    %v414 = vrot.slane %v413, 1
    %v415 = vmax.f32 %v413, %v414
    %v416 = vsel %vm368, %v407, -inf
    %v417 = vrot.slane %v416, 4
    %v418 = vmax.f32 %v416, %v417
    %v419 = vrot.slane %v418, 2
    %v420 = vmax.f32 %v418, %v419
    %v421 = vrot.slane %v420, 1
    %v422 = vmax.f32 %v420, %v421
    %v423 = vsel %vm360, %v408, -inf
    %v424 = vrot.slane %v423, 4
    %v425 = vmax.f32 %v423, %v424
    %v426 = vrot.slane %v425, 2
    %v427 = vmax.f32 %v425, %v426
    %v428 = vrot.slane %v427, 1
    %v429 = vmax.f32 %v427, %v428
    %v430 = vsel %vm368, %v408, -inf
    %v431 = vrot.slane %v430, 4
    %v432 = vmax.f32 %v430, %v431
    %v433 = vrot.slane %v432, 2
    %v434 = vmax.f32 %v432, %v433
    %v435 = vrot.slane %v434, 1
    %v436 = vmax.f32 %v434, %v435
    %v437 = vsel %vm147, %v415, %v422
    %v438 = vsel %vm246, %v437, %v429
    %v439 = vsel %vm392, %v438, %v436
    %440 = vst.msk [vmem:[%s4 + $0x4] sm:$0xf] %vm360, %v439
    %v441 = vld [vmem:[%s51] sm:$0xff]
    %v442 = vld [vmem:[%s51 + $0x8] sm:$0xff]
    %v443 = vld [vmem:[%s56] sm:$0xff]
    %v444 = vld [vmem:[%s56 + $0x8] sm:$0xff]
    %v445 = vmax.f32 %v441, %v443
    %v446 = vmax.f32 %v442, %v444
    %v447 = vld [vmem:[%s61] sm:$0xff]
    %v448 = vld [vmem:[%s61 + $0x8] sm:$0xff]
    %v449 = vmax.f32 %v445, %v447
    %v450 = vmax.f32 %v446, %v448
    %v451 = vld [vmem:[%s66] sm:$0xff]
    %v452 = vld [vmem:[%s66 + $0x8] sm:$0xff]
    %v453 = vmax.f32 %v449, %v451
    %v454 = vmax.f32 %v450, %v452
    %v455 = vsel %vm360, %v453, -inf
    %v456 = vrot.slane %v455, 4
    %v457 = vmax.f32 %v455, %v456
    %v458 = vrot.slane %v457, 2
    %v459 = vmax.f32 %v457, %v458
    %v460 = vrot.slane %v459, 1
    %v461 = vmax.f32 %v459, %v460
    %v462 = vsel %vm368, %v453, -inf
    %v463 = vrot.slane %v462, 4
    %v464 = vmax.f32 %v462, %v463
    %v465 = vrot.slane %v464, 2
    %v466 = vmax.f32 %v464, %v465
    %v467 = vrot.slane %v466, 1
    %v468 = vmax.f32 %v466, %v467
    %v469 = vsel %vm360, %v454, -inf
    %v470 = vrot.slane %v469, 4
    %v471 = vmax.f32 %v469, %v470
    %v472 = vrot.slane %v471, 2
    %v473 = vmax.f32 %v471, %v472
    %v474 = vrot.slane %v473, 1
    %v475 = vmax.f32 %v473, %v474
    %v476 = vsel %vm368, %v454, -inf
    %v477 = vrot.slane %v476, 4
    %v478 = vmax.f32 %v476, %v477
    %v479 = vrot.slane %v478, 2
    %v480 = vmax.f32 %v478, %v479
    %v481 = vrot.slane %v480, 1
    %v482 = vmax.f32 %v480, %v481
    %v483 = vsel %vm147, %v461, %v468
    %v484 = vsel %vm246, %v483, %v475
    %v485 = vsel %vm392, %v484, %v482
    %486 = vst.msk [vmem:[%s4 + $0x8] sm:$0xf] %vm360, %v485
    %v487 = vld [vmem:[%s71] sm:$0xff]
    %v488 = vld [vmem:[%s71 + $0x8] sm:$0xff]
    %v489 = vld [vmem:[%s76] sm:$0xff]
    %v490 = vld [vmem:[%s76 + $0x8] sm:$0xff]
    %v491 = vmax.f32 %v487, %v489
    %v492 = vmax.f32 %v488, %v490
    %v493 = vld [vmem:[%s81] sm:$0xff]
    %v494 = vld [vmem:[%s81 + $0x8] sm:$0xff]
    %v495 = vmax.f32 %v491, %v493
    %v496 = vmax.f32 %v492, %v494
    %v497 = vld [vmem:[%s86] sm:$0xff]
    %v498 = vld [vmem:[%s86 + $0x8] sm:$0xff]
    %v499 = vmax.f32 %v495, %v497
    %v500 = vmax.f32 %v496, %v498
    %v501 = vsel %vm360, %v499, -inf
    %v502 = vrot.slane %v501, 4
    %v503 = vmax.f32 %v501, %v502
    %v504 = vrot.slane %v503, 2
    %v505 = vmax.f32 %v503, %v504
    %v506 = vrot.slane %v505, 1
    %v507 = vmax.f32 %v505, %v506
    %v508 = vsel %vm368, %v499, -inf
    %v509 = vrot.slane %v508, 4
    %v510 = vmax.f32 %v508, %v509
    %v511 = vrot.slane %v510, 2
    %v512 = vmax.f32 %v510, %v511
    %v513 = vrot.slane %v512, 1
    %v514 = vmax.f32 %v512, %v513
    %v515 = vsel %vm360, %v500, -inf
    %v516 = vrot.slane %v515, 4
    %v517 = vmax.f32 %v515, %v516
    %v518 = vrot.slane %v517, 2
    %v519 = vmax.f32 %v517, %v518
    %v520 = vrot.slane %v519, 1
    %v521 = vmax.f32 %v519, %v520
    %v522 = vsel %vm368, %v500, -inf
    %v523 = vrot.slane %v522, 4
    %v524 = vmax.f32 %v522, %v523
    %v525 = vrot.slane %v524, 2
    %v526 = vmax.f32 %v524, %v525
    %v527 = vrot.slane %v526, 1
    %v528 = vmax.f32 %v526, %v527
    %v529 = vsel %vm147, %v507, %v514
    %v530 = vsel %vm246, %v529, %v521
    %v531 = vsel %vm392, %v530, %v528
    %532 = vst.msk [vmem:[%s4 + $0xc] sm:$0xf] %vm360, %v531
    // Predicated region
    $region6: #{tpu_custom_call.1} parent=1 // pred_check
      _
    $region7: #{tpu_custom_call.1} parent=1 // pred_check_branch
      %534 = sbr.rel (0) target = $region9
    $region8: #{tpu_custom_call.1} parent=1 // pred_region
      %s536 = ssub.s32 16, 16
      %537 = vsyncadd [#allocation3], %s536
      %s539 = sshll.u32 [#allocation2], 4
      %s540 = int_to_ptr.vmem [resolvable:$true] %s539
      %542 = dma.vmem_to_hbm [thread:$0]  %s540, 16, %s1, [#allocation3]
    $region9: #{tpu_custom_call.1} parent=1 // pred_fallthru
      _
    // Predicated region
    $region10: #{tpu_custom_call.1} parent=1 // pred_check
      _
    $region11: #{tpu_custom_call.1} parent=1 // pred_check_branch
      %544 = sbr.rel (0) target = $region13
    $region12: #{tpu_custom_call.1} parent=1 // pred_region
      %s546 = ssub.s32 64, 64
      %547 = vsyncadd [#allocation5], %s546
      %s549 = sshll.u32 [#allocation4], 4
      %s550 = int_to_ptr.vmem [resolvable:$true] %s549
      %552 = dma.vmem_to_hbm [thread:$0]  %s550, 64, %s2, [#allocation5]
    $region13: #{tpu_custom_call.1} parent=1 // pred_fallthru
      _
    // Predicated region
    $region14: #{tpu_custom_call.1} parent=1 // pred_check
      _
    $region15: #{tpu_custom_call.1} parent=1 // pred_check_branch
      %554 = sbr.rel (0) target = $region17
    $region16: #{tpu_custom_call.1} parent=1 // pred_region
      _
    $region17: #{tpu_custom_call.1} parent=1 // pred_fallthru
      _
    // Predicated region
    $region18: #{tpu_custom_call.1} parent=1 // pred_check
      _
    $region19: #{tpu_custom_call.1} parent=1 // pred_check_branch
      %556 = sbr.rel (0) target = $region21
    $region20: #{tpu_custom_call.1} parent=1 // pred_region
      _
    $region21: #{tpu_custom_call.1} parent=1 // pred_fallthru
      _
    // Predicated region
    $region22: #{tpu_custom_call.1} parent=1 // pred_check
      _
    $region23: #{tpu_custom_call.1} parent=1 // pred_check_branch
      %558 = sbr.rel (0) target = $region25
    $region24: #{tpu_custom_call.1} parent=1 // pred_region
      %559 = dma.done [#allocation3], 16
    $region25: #{tpu_custom_call.1} parent=1 // pred_fallthru
      _
    // Predicated region
    $region26: #{tpu_custom_call.1} parent=1 // pred_check
      _
    $region27: #{tpu_custom_call.1} parent=1 // pred_check_branch
      %561 = sbr.rel (0) target = $region29
    $region28: #{tpu_custom_call.1} parent=1 // pred_region
      %562 = dma.done [#allocation5], 64
    $region29: #{tpu_custom_call.1} parent=1 // pred_fallthru
      _
    // Predicated region
    $region30: #{tpu_custom_call.1} parent=1 // pred_check
      _
    $region31: #{tpu_custom_call.1} parent=1 // pred_check_branch
      %564 = sbr.rel (0) target = $region33
    $region32: #{tpu_custom_call.1} parent=1 // pred_region
      _
    $region33: #{tpu_custom_call.1} parent=1 // pred_fallthru
      _
    // Predicated region
    $region34: #{tpu_custom_call.1} parent=1 // pred_check
      _
    $region35: #{tpu_custom_call.1} parent=1 // pred_check_branch
      %566 = sbr.rel (0) target = $region37
    $region36: #{tpu_custom_call.1} parent=1 // pred_region
      _
    $region37: #{tpu_custom_call.1} parent=1 // pred_fallthru
      _
    %567 = vsyncpa [#allocation3], 1
    %568 = vsyncpa [#allocation5], 1

</llo_original>
